<compile_context>
chip_gen: v7x
topology: tpu7x:2x2x1
jax: 0.10.0
libtpu: 0.0.40
codegen_flags: <defaults>
</compile_context>

<pallas_src>
import functools

import jax
import jax.numpy as jnp
from jax.experimental import pallas as pl
from jax.experimental.pallas import tpu as pltpu


def _auto_weighted_loss_kernel(pl_ref, hist_ref, total_ref, hist_out_ref, *,
                               constraint, epsilon):
    x = pl_ref[...]                        # (N, 2) f32: lane 0 = param, lane 1 = loss
    p = x[:, 0:1]                          # (N, 1)
    l = x[:, 1:2]                          # (N, 1)

    if constraint == "softplus":
        # numerically stable softplus: max(x, 0) + log1p(exp(-|x|))
        c = jnp.maximum(p, 0.0) + jnp.log1p(jnp.exp(-jnp.abs(p)))
    elif constraint == "abs":
        c = jnp.abs(p)
    elif constraint == "exp":
        c = jnp.exp(p)
    else:
        c = p

    c2 = c * c
    w = 1.0 / (c2 + epsilon)               # exact divide (bit-faithful weighting)
    contrib = 0.5 * w * l + jnp.log1p(c2)  # (N, 1)

    # Scalar total -> SMEM (avoids a padded VMEM tile + masked partial store).
    total_ref[0, 0] = jnp.sum(contrib)

    # Fused weight_history update: roll(-1, axis=1) then overwrite last column.
    h = hist_ref[...]                      # (N, H)
    H = h.shape[1]
    hist_out_ref[:, : H - 1] = h[:, 1:]
    hist_out_ref[:, H - 1:] = w


def advanced_auto_weighted_loss(params, losses, weight_history, *,
                                constraint="softplus", epsilon=1e-8):
    """Returns (total_loss scalar, updated weight_history)."""
    num_losses = params.shape[0]

    # One stack for the task losses (no per-element asarray/reshape chain).
    losses_arr = losses if isinstance(losses, jax.Array) else jnp.stack(losses)
    losses_arr = losses_arr.astype(jnp.float32).reshape(num_losses)
    params_arr = params.astype(jnp.float32).reshape(num_losses)

    # Single packed (N, 2) VMEM input: lane 0 = params, lane 1 = losses.
    packed = jnp.stack([params_arr, losses_arr], axis=1)

    hist = weight_history.astype(jnp.float32)
    n, hlen = hist.shape

    kernel = functools.partial(_auto_weighted_loss_kernel,
                               constraint=constraint, epsilon=epsilon)

    cost = pl.CostEstimate(
        flops=12 * num_losses,
        transcendentals=3 * num_losses,
        bytes_accessed=2 * n * hlen * 4 + num_losses * 2 * 4 + 4,
    )

    total, new_history = pl.pallas_call(
        kernel,
        out_shape=(jax.ShapeDtypeStruct((1, 1), jnp.float32),
                   jax.ShapeDtypeStruct((n, hlen), jnp.float32)),
        in_specs=[pl.BlockSpec(memory_space=pltpu.MemorySpace.VMEM),
                  pl.BlockSpec(memory_space=pltpu.MemorySpace.VMEM)],
        out_specs=(pl.BlockSpec(memory_space=pltpu.MemorySpace.SMEM),
                   pl.BlockSpec(memory_space=pltpu.MemorySpace.VMEM)),
        input_output_aliases={1: 1},   # donate weight_history -> updated history
        cost_estimate=cost,
    )(packed, hist)

    # TODO(synk): grad_clip applies to the backward pass only (no forward
    # effect); training use would need a custom_vjp around this forward.
    return total[0, 0], new_history


def _reference(params, losses, weight_history, epsilon=1e-8):
    c = jax.nn.softplus(params)
    w = 1.0 / (c ** 2 + epsilon)
    total = jnp.float32(0.0)
    for i, loss in enumerate(losses):
        total = total + 0.5 * w[i] * loss + jnp.log1p(c[i] ** 2)
    hist = jnp.roll(weight_history, -1, axis=1).at[:, -1].set(w)
    return total, hist


if __name__ == "__main__":
    key = jax.random.PRNGKey(0)
    k_param, k_pred, k_tgt = jax.random.split(key, 3)

    num_losses = 2
    # init_method='normal': mean=1.0, std=0.1 (deterministic via PRNGKey(0))
    params = 1.0 + 0.1 * jax.random.normal(k_param, (num_losses,), jnp.float32)
    weight_history = jnp.zeros((num_losses, 1000), jnp.float32)

    # Example task losses derived from small tensors (NCHW-like data).
    pred = jax.random.normal(k_pred, (2, 4, 16, 16), jnp.float32)
    target = jax.random.normal(k_tgt, (2, 4, 16, 16), jnp.float32)
    loss_mse = jnp.mean((pred - target) ** 2)
    loss_l1 = jnp.mean(jnp.abs(pred - target))
    losses = (loss_mse, loss_l1)

    total, new_hist = advanced_auto_weighted_loss(params, losses, weight_history)
    total = jax.block_until_ready(total)
    new_hist = jax.block_until_ready(new_hist)

    ref_total, ref_hist = _reference(params, losses, weight_history)
    assert jnp.allclose(total, ref_total, rtol=1e-5, atol=1e-6), (total, ref_total)
    assert jnp.allclose(new_hist, ref_hist, rtol=1e-5, atol=1e-6)

    print("KERNEL_OK")
</pallas_src>

<mosaic_0001>
module attributes {stable_mosaic.version = 11 : i64} {
  func.func @_auto_weighted_loss_kernel(%arg0: memref<2x2xf32, #tpu.memory_space<vmem>>, %arg1: memref<2x1000xf32, #tpu.memory_space<vmem>>, %arg2: memref<1x1xf32, #tpu.memory_space<smem>>, %arg3: memref<2x1000xf32, #tpu.memory_space<vmem>>) attributes {dimension_semantics = [], scalar_prefetch = 0 : i64, scratch_operands = 0 : i64, tpu.core_type = #tpu.core_type<tc>} {
    %c0 = arith.constant 0 : index
    %c0_0 = arith.constant 0 : index
    %0 = vector.load %arg0[%c0, %c0_0] : memref<2x2xf32, #tpu.memory_space<vmem>>, vector<2x2xf32>
    %1 = vector.extract_strided_slice %0 {offsets = [0, 0], sizes = [2, 1], strides = [1, 1]} : vector<2x2xf32> to vector<2x1xf32>
    %2 = vector.extract_strided_slice %0 {offsets = [0, 1], sizes = [2, 1], strides = [1, 1]} : vector<2x2xf32> to vector<2x1xf32>
    %cst = arith.constant 0.000000e+00 : f32
    %3 = vector.broadcast %cst : f32 to vector<2x1xf32>
    %4 = arith.maximumf %1, %3 : vector<2x1xf32>
    %5 = math.absf %1 : vector<2x1xf32>
    %cst_1 = arith.constant 0.000000e+00 : f32
    %6 = vector.broadcast %cst_1 : f32 to vector<2x1xf32>
    %7 = arith.subf %6, %5 : vector<2x1xf32>
    %8 = math.exp %7 : vector<2x1xf32>
    %9 = math.log1p %8 : vector<2x1xf32>
    %10 = arith.addf %4, %9 : vector<2x1xf32>
    %11 = arith.mulf %10, %10 : vector<2x1xf32>
    %cst_2 = arith.constant 9.99999993E-9 : f32
    %12 = vector.broadcast %cst_2 : f32 to vector<2x1xf32>
    %13 = arith.addf %11, %12 : vector<2x1xf32>
    %cst_3 = arith.constant 1.000000e+00 : f32
    %14 = vector.broadcast %cst_3 : f32 to vector<2x1xf32>
    %15 = arith.divf %14, %13 : vector<2x1xf32>
    %cst_4 = arith.constant 5.000000e-01 : f32
    %16 = vector.broadcast %cst_4 : f32 to vector<2x1xf32>
    %17 = arith.mulf %16, %15 : vector<2x1xf32>
    %18 = arith.mulf %17, %2 : vector<2x1xf32>
    %19 = math.log1p %11 : vector<2x1xf32>
    %20 = arith.addf %18, %19 : vector<2x1xf32>
    %21 = vector.shape_cast %20 : vector<2x1xf32> to vector<1x2x1xf32>
    %cst_5 = arith.constant dense<0.000000e+00> : vector<1xf32>
    %22 = vector.multi_reduction <add>, %21, %cst_5 [1, 2] : vector<1x2x1xf32> to vector<1xf32>
    %23 = vector.shape_cast %22 : vector<1xf32> to vector<1x1x1xf32>
    %24 = vector.extract %23[0, 0, 0] : f32 from vector<1x1x1xf32>
    %c0_6 = arith.constant 0 : index
    %c0_7 = arith.constant 0 : index
    %25 = memref.load %arg2[%c0_6, %c0_7] : memref<1x1xf32, #tpu.memory_space<smem>>
    memref.store %24, %arg2[%c0_6, %c0_7] : memref<1x1xf32, #tpu.memory_space<smem>>
    %c0_8 = arith.constant 0 : index
    %c0_9 = arith.constant 0 : index
    %26 = vector.load %arg1[%c0_8, %c0_9] : memref<2x1000xf32, #tpu.memory_space<vmem>>, vector<2x1000xf32>
    %27 = vector.extract_strided_slice %26 {offsets = [0, 1], sizes = [2, 999], strides = [1, 1]} : vector<2x1000xf32> to vector<2x999xf32>
    %c0_10 = arith.constant 0 : index
    %c0_11 = arith.constant 0 : index
    %28 = vector.load %arg3[%c0_10, %c0_11] : memref<2x1000xf32, #tpu.memory_space<vmem>>, vector<2x999xf32>
    tpu.vector_store %arg3[%c0_10, %c0_11], %27 {strides = array<i32>} : memref<2x1000xf32, #tpu.memory_space<vmem>>, vector<2x999xf32>,
    %c0_12 = arith.constant 0 : index
    %c999 = arith.constant 999 : index
    %29 = vector.load %arg3[%c0_12, %c999] : memref<2x1000xf32, #tpu.memory_space<vmem>>, vector<2x1xf32>
    tpu.vector_store %arg3[%c0_12, %c999], %15 {strides = array<i32>} : memref<2x1000xf32, #tpu.memory_space<vmem>>, vector<2x1xf32>,
    return
  }
}

</mosaic_0001>

<llo_original>
// kernel: tpu_custom_call.1
$region0: #{tpu_custom_call.1}
  #allocation0 [shape = 'u32[]', space=smem, size = 0x4, offset = 0x4, fixed_abs, tag = 'smem constant byte address 0x4 - core index']
  #allocation1 [shape = 'u32[144,128]{1,0:T(1,128)}', space=vmem, size = 0x12000, scoped, tag = 'internal scratch']
  %s0 = inlined_call_operand.vmem [shape: f32[2,2], index: 0, kind: input, shape index: {}]
  %s1 = inlined_call_operand.hbm [shape: f32[2,1000], index: 1, kind: input, shape index: {}, may-alias: {1,3}]
  %s2 = inlined_call_operand.hbm [shape: f32[1,1], index: 2, kind: output, shape index: {0}]
  %s3 = inlined_call_operand.hbm [shape: f32[2,1000], index: 3, kind: output, shape index: {1}, may-alias: {1,3}]
  %4 = xla_tuple %s2, %s3
  %s5 = sld [smem:[#allocation0]]
  $region30: #{tpu_custom_call.1} parent=0
    _
  %s7 = ssub.s32 1, %s5
  %s8 = scalar_select 0, %s7, %s5
  $region1: #{tpu_custom_call.1} parent=0
    #allocation2 [shape = 'u8[8192]{0}', space=vmem, size = 0x2000, scoped, tag = 'input window, operand 1, single buffered']
    #allocation3 [shape = 's32[1]{0}', space=sflag, size = 0x4, scoped, tag = 'scoped memory for tpu_custom_call.1']
    #allocation4 [shape = 's32[1]{0}', space=sflag, size = 0x4, scoped, tag = 'scoped memory for tpu_custom_call.1']
    #allocation5 [shape = 's32[1]{0}', space=sflag, size = 0x4, scoped, tag = 'scoped memory for tpu_custom_call.1']
    #allocation6 [shape = 'u8[512]{0}', space=smem, size = 0x200, scoped, tag = 'output window, operand 0, single buffered']
    #allocation7 [shape = 'u8[8192]{0}', space=vmem, size = 0x2000, scoped, tag = 'output window, operand 1, single buffered']
    %9 = vsyncpa [#allocation3], 0
    %10 = vsyncpa [#allocation5], 0
    %11 = vsyncpa [#allocation4], 0
    // Predicated region
    $region2: #{tpu_custom_call.1} parent=1 // pred_check
      _
    $region3: #{tpu_custom_call.1} parent=1 // pred_check_branch
      %13 = sbr.rel (0) target = $region5
    $region4: #{tpu_custom_call.1} parent=1 // pred_region
      _
    $region5: #{tpu_custom_call.1} parent=1 // pred_fallthru
      _
    // Predicated region
    $region6: #{tpu_custom_call.1} parent=1 // pred_check
      _
    $region7: #{tpu_custom_call.1} parent=1 // pred_check_branch
      %15 = sbr.rel (0) target = $region9
    $region8: #{tpu_custom_call.1} parent=1 // pred_region
      %s17 = ssub.s32 256, 256
      %18 = vsyncadd [#allocation3], %s17
      %s20 = sshll.u32 [#allocation2], 4
      %s21 = int_to_ptr.vmem [resolvable:$true] %s20
      %23 = dma.hbm_to_vmem [thread:$0]  %s1, 256, %s21, [#allocation3]
    $region9: #{tpu_custom_call.1} parent=1 // pred_fallthru
      _
    // Predicated region
    $region10: #{tpu_custom_call.1} parent=1 // pred_check
      _
    $region11: #{tpu_custom_call.1} parent=1 // pred_check_branch
      %25 = sbr.rel (0) target = $region13
    $region12: #{tpu_custom_call.1} parent=1 // pred_region
      %26 = dma.done [#allocation3], 256
    $region13: #{tpu_custom_call.1} parent=1 // pred_fallthru
      _
    %v27 = vld [vmem:[%s0] sm:$0x3]
    %v28 = vmax.f32 %v27, 0.0
    %v29 = vand.u32 2147483647, %v27
    %v30 = vsub.f32 0.0, %v29
    %v31 = vmul.f32 %v30, 1.442695
    %v32 = vpow.pop %v31
    %v33 = vadd.f32 %v32, 1.0
    %v34 = vlog2.pop %v33
    %v35 = vmul.f32 %v34, 0.6931472
    %v36 = vmul.f32 -0.5, %v32
    %v37 = vadd.f32 %v36, 1.0
    %v38 = vmul.f32 %v37, %v32
    %v39 = vand.u32 2147483647, %v32
    %vm40 = vcmp.lt.f32.partialorder %v39, 0.0004427343
    %v41 = vsel %vm40, %v38, %v35
    %v42 = vadd.f32 %v28, %v41
    %v43 = vmul.f32 %v42, %v42
    %v44 = vadd.f32 %v43, 1e-08
    %v45 = vrcp.pop %v44
    %v46 = vmul.f32 1.0, %v45
    %v47 = vmul.f32 %v46, 0.5
    %49 = vrot.lane.b32.xlu0 %v27, 127
    %v50 = vpop.permute.xlu0 %49
    %v52 = vmul.f32 %v47, %v50
    %v53 = vadd.f32 %v43, 1.0
    %v54 = vlog2.pop %v53
    %v55 = vmul.f32 %v54, 0.6931472
    %v56 = vmul.f32 -0.5, %v43
    %v57 = vadd.f32 %v56, 1.0
    %v58 = vmul.f32 %v57, %v43
    %v59 = vand.u32 2147483647, %v43
    %vm60 = vcmp.lt.f32.partialorder %v59, 0.0004427343
    %v61 = vsel %vm60, %v58, %v55
    %v62 = vadd.f32 %v52, %v61
    %vm63 = vcmask 1024
    %v64 = vsel %vm63, %v62, 0.0
    %65 = vadd.xlane.f32.xlu0 %v64
    %v66 = vpop.xlane.xlu0 %65
    %v67 = vrot.slane %v66, 4
    %v68 = vadd.f32 %v66, %v67
    %v69 = vrot.slane %v68, 2
    %v70 = vadd.f32 %v68, %v69
    %v71 = vrot.slane %v70, 1
    %v72 = vadd.f32 %v70, %v71
    %s73 = vtos %v72
    %s74 = scalar_lea.smem [#allocation6], 0
    %75 = sst [smem:[%s74]] %s73
    %v76 = vld [vmem:[#allocation2] sm:$0xff]
    %v77 = vld [vmem:[#allocation2 + $0x8] sm:$0xff]
    %80 = vrot.lane.b32.xlu0 %v76, 127
    %v81 = vpop.permute.xlu0 %80
    %82 = vrot.lane.b32.xlu0 %v77, 127
    %v83 = vpop.permute.xlu0 %82
    %v84 = vrot.slane %v81, 2
    %v85 = vrot.slane %v83, 2
    %vm86 = vcmask 1045504
    %v87 = vsel %vm86, %v84, %v85
    %vm88 = vcmask 1039360
    %v89 = vsel %vm88, %v81, %v87
    %v90 = vsel %vm88, %v83, %v85
    %93 = vst [vmem:[#allocation7] sm:$0xff] %v89
    %vm94 = vcmask 1041408
    %vm95 = vcmask 1043458
    %vm96 = vmor %vm95, %vm94
    %vm97 = vcmask 1045508
    %vm98 = vmor %vm97, %vm96
    %vm99 = vcmask 842758
    %vm100 = vmor %vm99, %vm98
    %101 = vst.msk [vmem:[#allocation7 + $0x8] sm:$0xff] %vm100, %v90
    %v104 = vunpack.c.l.s4 1983009808
    %v105 = vunpack.c.0.s8 %v104
    %v106 = vlaneseq
    %v107 = vshrl.u32 %v106, 7
    %v108 = vsub.s32 %v105, %v107
    %v109 = vrot.slane %v46, %v108
    %110 = vrot.lane.b32.xlu0 %v109, 103
    %v111 = vpop.permute.xlu0 %110
    %vm113 = vcmask 845624
    %114 = vst.msk [vmem:[#allocation7 + $0xe] sm:$0x3] %vm113, %v111
    // Predicated region
    $region14: #{tpu_custom_call.1} parent=1 // pred_check
      _
    $region15: #{tpu_custom_call.1} parent=1 // pred_check_branch
      %116 = sbr.rel (0) target = $region17
    $region16: #{tpu_custom_call.1} parent=1 // pred_region
      %s118 = ssub.s32 16, 16
      %119 = vsyncadd [#allocation5], %s118
      %122 = dma.smem_to_hbm [#allocation6], 16, %s2, [#allocation5]
    $region17: #{tpu_custom_call.1} parent=1 // pred_fallthru
      _
    // Predicated region
    $region18: #{tpu_custom_call.1} parent=1 // pred_check
      _
    $region19: #{tpu_custom_call.1} parent=1 // pred_check_branch
      %124 = sbr.rel (0) target = $region21
    $region20: #{tpu_custom_call.1} parent=1 // pred_region
      %s126 = ssub.s32 256, 256
      %127 = vsyncadd [#allocation4], %s126
      %s129 = sshll.u32 [#allocation7], 4
      %s130 = int_to_ptr.vmem [resolvable:$true] %s129
      %132 = dma.vmem_to_hbm [thread:$0]  %s130, 256, %s3, [#allocation4]
    $region21: #{tpu_custom_call.1} parent=1 // pred_fallthru
      _
    // Predicated region
    $region22: #{tpu_custom_call.1} parent=1 // pred_check
      _
    $region23: #{tpu_custom_call.1} parent=1 // pred_check_branch
      %134 = sbr.rel (0) target = $region25
    $region24: #{tpu_custom_call.1} parent=1 // pred_region
      %135 = dma.done [#allocation5], 16
    $region25: #{tpu_custom_call.1} parent=1 // pred_fallthru
      _
    // Predicated region
    $region26: #{tpu_custom_call.1} parent=1 // pred_check
      _
    $region27: #{tpu_custom_call.1} parent=1 // pred_check_branch
      %137 = sbr.rel (0) target = $region29
    $region28: #{tpu_custom_call.1} parent=1 // pred_region
      %138 = dma.done [#allocation4], 256
    $region29: #{tpu_custom_call.1} parent=1 // pred_fallthru
      _
    %139 = sfence
    %140 = vsyncpa [#allocation3], 1
    %141 = vsyncpa [#allocation4], 1
    %142 = vsyncpa [#allocation5], 1

</llo_original>
